<compile_context>
chip_gen: v6e
topology: v6e:2x2x1
jax: 0.10.0
libtpu: 0.0.40
codegen_flags: <defaults>
</compile_context>

<pallas_src>
import math
from functools import partial

import jax
import jax.numpy as jnp
from jax import lax
from jax.experimental import pallas as pl
from jax.experimental.pallas import tpu as pltpu

NUM_GROUPS = 32
GN_EPS = 1e-5
DEFAULT_VMEM_LIMIT = 48 * 1024 * 1024  # fits v7x's 64 MiB/TC with headroom


def _pick_tile(n, target):
    """Largest divisor of n <= target, preferring MXU-aligned multiples.

    Tries multiples of 256 first (v6e/v7x MXU), then 128 (v5e MXU), then 8
    (sublane granularity). Falls back to n itself.
    """
    for align in (256, 128, 8):
        cand = (min(target, n) // align) * align
        while cand >= align:
            if n % cand == 0:
                return cand
            cand -= align
    return n


# ---------------------------------------------------------------------------
# Pass 1: GroupNorm statistics (per-batch, per-channel sum / sum of squares).
# ---------------------------------------------------------------------------
def gn_stats_kernel(x_ref, sum_ref, sumsq_ref):
    i = pl.program_id(1)
    x = x_ref[0]                                    # (ts, C) f32
    ps = jnp.sum(x, axis=0, keepdims=True)          # (1, C)
    pss = jnp.sum(x * x, axis=0, keepdims=True)     # (1, C)

    @pl.when(i == 0)
    def _():
        sum_ref[0] = ps
        sumsq_ref[0] = pss

    @pl.when(i != 0)
    def _():
        sum_ref[0] += ps
        sumsq_ref[0] += pss


# ---------------------------------------------------------------------------
# Pass 2: GroupNorm affine + fused QKV projection, done ONCE per position.
#         Writes bf16 Q (pre-scaled by 1/sqrt(C)), K, V slabs to HBM.
# ---------------------------------------------------------------------------
def qkv_project_kernel(x_ref, gsc_ref, gsh_ref, wqkv_ref, bqkv_ref,
                       q_ref, k_ref, v_ref, *, compute_dtype):
    C = q_ref.shape[-1]
    h = (x_ref[0] * gsc_ref[0] + gsh_ref[0]).astype(compute_dtype)      # (tp, C)
    qkv = jnp.dot(h, wqkv_ref[...],
                  preferred_element_type=jnp.float32) + bqkv_ref[...]    # (tp, 3C)
    q_ref[0] = qkv[:, :C].astype(compute_dtype)
    k_ref[0] = qkv[:, C:2 * C].astype(compute_dtype)
    v_ref[0] = qkv[:, 2 * C:].astype(compute_dtype)


# ---------------------------------------------------------------------------
# Pass 3: online-softmax attention over precomputed Q/K/V + output projection
#         + residual, tiled over (batch, q-tile, kv-tile).
# ---------------------------------------------------------------------------
def attn_flash_kernel(q_ref, k_ref, v_ref, xq_ref, wp_ref, bp_ref,
                      o_ref,
                      m_scr, l_scr, acc_scr, *, compute_dtype):
    kv = pl.program_id(2)
    nkv = pl.num_programs(2)

    @pl.when(kv == 0)
    def _():
        m_scr[...] = jnp.full_like(m_scr, -jnp.inf)
        l_scr[...] = jnp.zeros_like(l_scr)
        acc_scr[...] = jnp.zeros_like(acc_scr)

    # Scores: contract channel dims directly (no k transpose). Q is already
    # scaled by 1/sqrt(C) (folded into the projection weights).
    s = lax.dot_general(q_ref[0], k_ref[0], (((1,), (1,)), ((), ())),
                        preferred_element_type=jnp.float32)             # (tq, tk)

    # Online softmax (f32 state).
    m_prev = m_scr[...]
    m_new = jnp.maximum(m_prev, jnp.max(s, axis=-1, keepdims=True))
    alpha = jnp.exp(m_prev - m_new)
    p = jnp.exp(s - m_new)
    l_scr[...] = alpha * l_scr[...] + jnp.sum(p, axis=-1, keepdims=True)
    acc_scr[...] = alpha * acc_scr[...] + jnp.dot(
        p.astype(compute_dtype), v_ref[0], preferred_element_type=jnp.float32)
    m_scr[...] = m_new

    # Finalize: exact normalization (once per q tile), output projection,
    # residual add against the original f32 x tile.
    @pl.when(kv == nkv - 1)
    def _():
        attn = acc_scr[...] / l_scr[...]
        proj = jnp.dot(attn.astype(compute_dtype), wp_ref[...],
                       preferred_element_type=jnp.float32) + bp_ref[...]
        o_ref[0] = xq_ref[0] + proj


# ---------------------------------------------------------------------------
# Wrapper
# ---------------------------------------------------------------------------
def attn_block_pallas(x_nchw, params, *, tq=None, tk=None, tp=None,
                      compute_dtype=jnp.bfloat16,
                      vmem_limit_bytes=DEFAULT_VMEM_LIMIT):
    """x_nchw: (B, C, H, W) float32. Returns (B, C, H, W) float32."""
    B, C, H, W = x_nchw.shape
    HW = H * W
    G = NUM_GROUPS
    assert C % G == 0, "GroupNorm(32, C) requires C % 32 == 0"
    cg = C // G

    # TODO(synk): if the surrounding model can run NHWC end-to-end, drop these
    # standalone layout transposes (full HBM read+write each way).
    x = jnp.transpose(x_nchw, (0, 2, 3, 1)).reshape(B, HW, C)

    tq = _pick_tile(HW, 512) if tq is None else tq
    tk = _pick_tile(HW, 512) if tk is None else tk
    tp = _pick_tile(HW, 512) if tp is None else tp
    ts = _pick_tile(HW, 512)
    assert HW % tq == 0 and HW % tk == 0 and HW % tp == 0 and HW % ts == 0

    # ---- pass 1: GroupNorm statistics (tiled HW reduction) ------------------
    csum, csumsq = pl.pallas_call(
        gn_stats_kernel,
        out_shape=(jax.ShapeDtypeStruct((B, 1, C), jnp.float32),
                   jax.ShapeDtypeStruct((B, 1, C), jnp.float32)),
        grid_spec=pltpu.PrefetchScalarGridSpec(
            num_scalar_prefetch=0,
            grid=(B, HW // ts),
            in_specs=[pl.BlockSpec((1, ts, C), lambda b, i: (b, i, 0))],
            out_specs=(pl.BlockSpec((1, 1, C), lambda b, i: (b, 0, 0)),
                       pl.BlockSpec((1, 1, C), lambda b, i: (b, 0, 0))),
        ),
        compiler_params=pltpu.CompilerParams(
            dimension_semantics=("parallel", "arbitrary"),
            vmem_limit_bytes=vmem_limit_bytes),
    )(x)

    # ---- finalize GroupNorm into a per-(batch, channel) affine (tiny math) --
    # NOTE: biased variance via E[x^2]-E[x]^2 in f32 (matches nn.GroupNorm up
    # to rounding). Consider two-pass/Welford if production activations have a
    # large mean-to-spread ratio.
    gsum = csum[:, 0, :].reshape(B, G, cg).sum(axis=-1)        # (B, G)
    gsumsq = csumsq[:, 0, :].reshape(B, G, cg).sum(axis=-1)    # (B, G)
    n_elem = float(HW * cg)
    gmean = gsum / n_elem
    gvar = gsumsq / n_elem - gmean * gmean
    ginv = lax.rsqrt(gvar + GN_EPS)
    mean_c = jnp.repeat(gmean, cg, axis=1)                     # (B, C)
    inv_c = jnp.repeat(ginv, cg, axis=1)                       # (B, C)
    gamma = params["gn_gamma"][None, :]
    beta = params["gn_beta"][None, :]
    gn_scale = (gamma * inv_c).reshape(B, 1, C).astype(jnp.float32)
    gn_shift = (beta - gamma * mean_c * inv_c).reshape(B, 1, C).astype(jnp.float32)

    # ---- weight prep: 1x1 convs as matmuls; fuse Q/K/V; fold 1/sqrt(C) into
    #      the Q weight/bias so the attention pass never rescales ------------
    inv_sqrt_c = float(C) ** -0.5
    wq = params["wq"].reshape(C, C).T * inv_sqrt_c
    wk = params["wk"].reshape(C, C).T
    wv = params["wv"].reshape(C, C).T
    wp = params["wp"].reshape(C, C).T
    wqkv = jnp.concatenate([wq, wk, wv], axis=1).astype(compute_dtype)   # (C, 3C)
    bqkv = jnp.concatenate(
        [params["bq"] * inv_sqrt_c, params["bk"], params["bv"]]
    ).reshape(1, 3 * C).astype(jnp.float32)
    wp_c = wp.astype(compute_dtype)
    bp = params["bp"].reshape(1, C).astype(jnp.float32)

    # ---- pass 2: GN affine + fused QKV projection (once per position) -------
    # TODO(synk): for C < 128, pad channels to a lane multiple to avoid the
    # sub-lane qkv slices and MXU under-fill (only matters for tiny-C configs).
    q_p, k_p, v_p = pl.pallas_call(
        partial(qkv_project_kernel, compute_dtype=compute_dtype),
        out_shape=(jax.ShapeDtypeStruct((B, HW, C), compute_dtype),
                   jax.ShapeDtypeStruct((B, HW, C), compute_dtype),
                   jax.ShapeDtypeStruct((B, HW, C), compute_dtype)),
        grid_spec=pltpu.PrefetchScalarGridSpec(
            num_scalar_prefetch=0,
            grid=(B, HW // tp),
            in_specs=[
                pl.BlockSpec((1, tp, C), lambda b, i: (b, i, 0)),   # x
                pl.BlockSpec((1, 1, C), lambda b, i: (b, 0, 0)),    # gn scale
                pl.BlockSpec((1, 1, C), lambda b, i: (b, 0, 0)),    # gn shift
                pl.BlockSpec((C, 3 * C), lambda b, i: (0, 0)),      # wqkv
                pl.BlockSpec((1, 3 * C), lambda b, i: (0, 0)),      # bqkv
            ],
            out_specs=(pl.BlockSpec((1, tp, C), lambda b, i: (b, i, 0)),
                       pl.BlockSpec((1, tp, C), lambda b, i: (b, i, 0)),
                       pl.BlockSpec((1, tp, C), lambda b, i: (b, i, 0))),
        ),
        compiler_params=pltpu.CompilerParams(
            dimension_semantics=("parallel", "parallel"),
            vmem_limit_bytes=vmem_limit_bytes),
    )(x, gn_scale, gn_shift, wqkv, bqkv)

    # ---- pass 3: flash attention over precomputed bf16 Q/K/V ----------------
    out = pl.pallas_call(
        partial(attn_flash_kernel, compute_dtype=compute_dtype),
        out_shape=jax.ShapeDtypeStruct((B, HW, C), jnp.float32),
        grid_spec=pltpu.PrefetchScalarGridSpec(
            num_scalar_prefetch=0,
            grid=(B, HW // tq, HW // tk),
            in_specs=[
                pl.BlockSpec((1, tq, C), lambda b, qi, ki: (b, qi, 0)),  # q
                pl.BlockSpec((1, tk, C), lambda b, qi, ki: (b, ki, 0)),  # k
                pl.BlockSpec((1, tk, C), lambda b, qi, ki: (b, ki, 0)),  # v
                pl.BlockSpec((1, tq, C), lambda b, qi, ki: (b, qi, 0)),  # x (residual)
                pl.BlockSpec((C, C), lambda b, qi, ki: (0, 0)),          # wp
                pl.BlockSpec((1, C), lambda b, qi, ki: (0, 0)),          # bp
            ],
            out_specs=pl.BlockSpec((1, tq, C), lambda b, qi, ki: (b, qi, 0)),
            scratch_shapes=[
                pltpu.VMEM((tq, 1), jnp.float32),     # running max
                pltpu.VMEM((tq, 1), jnp.float32),     # running denominator
                pltpu.VMEM((tq, C), jnp.float32),     # output accumulator
            ],
        ),
        compiler_params=pltpu.CompilerParams(
            dimension_semantics=("parallel", "parallel", "arbitrary"),
            vmem_limit_bytes=vmem_limit_bytes),
    )(q_p, k_p, v_p, x, wp_c, bp)

    return jnp.transpose(out.reshape(B, H, W, C), (0, 3, 1, 2))


# ---------------------------------------------------------------------------
# Pure-JAX reference mirroring the PyTorch forward.
# ---------------------------------------------------------------------------
def attn_block_reference(x_nchw, params):
    B, C, H, W = x_nchw.shape
    HW = H * W
    x = jnp.transpose(x_nchw, (0, 2, 3, 1)).reshape(B, HW, C)

    cg = C // NUM_GROUPS
    xg = x.reshape(B, HW, NUM_GROUPS, cg)
    mean = xg.mean(axis=(1, 3), keepdims=True)
    var = xg.var(axis=(1, 3), keepdims=True)
    h = (xg - mean) / jnp.sqrt(var + GN_EPS)
    h = h.reshape(B, HW, C) * params["gn_gamma"][None, None, :] \
        + params["gn_beta"][None, None, :]

    def conv1x1(t, w, b):
        return jnp.einsum("bsc,oc->bso", t, w.reshape(C, C)) + b[None, None, :]

    q = conv1x1(h, params["wq"], params["bq"])
    k = conv1x1(h, params["wk"], params["bk"])
    v = conv1x1(h, params["wv"], params["bv"])
    w = jnp.einsum("bqc,bkc->bqk", q, k) * (float(C) ** -0.5)
    w = jax.nn.softmax(w, axis=-1)
    a = jnp.einsum("bqk,bkc->bqc", w, v)
    out = conv1x1(a, params["wp"], params["bp"])
    out = x + out
    return jnp.transpose(out.reshape(B, H, W, C), (0, 3, 1, 2))


def init_params(key, C):
    ks = jax.random.split(key, 10)
    fan = 1.0 / math.sqrt(C)
    return {
        "gn_gamma": 1.0 + 0.1 * jax.random.normal(ks[0], (C,), jnp.float32),
        "gn_beta": 0.1 * jax.random.normal(ks[1], (C,), jnp.float32),
        "wq": fan * jax.random.normal(ks[2], (C, C, 1, 1), jnp.float32),
        "bq": fan * jax.random.normal(ks[3], (C,), jnp.float32),
        "wk": fan * jax.random.normal(ks[4], (C, C, 1, 1), jnp.float32),
        "bk": fan * jax.random.normal(ks[5], (C,), jnp.float32),
        "wv": fan * jax.random.normal(ks[6], (C, C, 1, 1), jnp.float32),
        "bv": fan * jax.random.normal(ks[7], (C,), jnp.float32),
        "wp": fan * jax.random.normal(ks[8], (C, C, 1, 1), jnp.float32),
        "bp": fan * jax.random.normal(ks[9], (C,), jnp.float32),
    }


if __name__ == "__main__":
    # GroupNorm(32, C) requires C % 32 == 0 -> C = 64; H = W = 16 so that the
    # flash tiling actually runs multiple q/kv tiles.
    B, C, H, W = 2, 64, 16, 16
    key = jax.random.PRNGKey(0)
    kx, kp = jax.random.split(key)
    x = jax.random.normal(kx, (B, C, H, W), jnp.float32)
    params = init_params(kp, C)

    ref = attn_block_reference(x, params)

    # Exact-math check of the three-pass restructure (f32 MXU inputs),
    # multiple q and kv tiles to exercise the online softmax.
    out_f32 = jax.block_until_ready(
        attn_block_pallas(x, params, tq=64, tk=64, tp=64,
                          compute_dtype=jnp.float32))
    assert out_f32.shape == (B, C, H, W)
    err_f32 = float(jnp.max(jnp.abs(out_f32 - ref)))
    assert err_f32 < 3e-3, err_f32

    # Fast path: bf16 MXU inputs, f32 accumulation (looser tolerance); bf16
    # casts of the GN-affined activations / attention probs dominate the error.
    out_bf16 = jax.block_until_ready(
        attn_block_pallas(x, params, tq=128, tk=128, tp=128,
                          compute_dtype=jnp.bfloat16))
    assert out_bf16.shape == (B, C, H, W)
    err_bf16 = float(jnp.max(jnp.abs(out_bf16 - ref)))
    assert err_bf16 < 8e-2, err_bf16

    print("KERNEL_OK")
</pallas_src>

<mosaic_0001>
module attributes {stable_mosaic.version = 11 : i64} {
  func.func @gn_stats_kernel(%arg0: i32, %arg1: i32, %arg2: memref<1x256x64xf32, #tpu.memory_space<vmem>>, %arg3: memref<1x1x64xf32, #tpu.memory_space<vmem>>, %arg4: memref<1x1x64xf32, #tpu.memory_space<vmem>>) attributes {dimension_semantics = [#tpu.dimension_semantics<parallel>, #tpu.dimension_semantics<arbitrary>], iteration_bounds = array<i64: 2, 1>, scalar_prefetch = 0 : i64, scratch_operands = 0 : i64, tpu.core_type = #tpu.core_type<tc>, window_params = [{transform_indices = @transform_0, window_bounds = array<i64: 1, 256, 64>}, {transform_indices = @transform_1, window_bounds = array<i64: 1, 1, 64>}, {transform_indices = @transform_2, window_bounds = array<i64: 1, 1, 64>}]} {
    %c0 = arith.constant 0 : index
    %c0_0 = arith.constant 0 : index
    %c0_1 = arith.constant 0 : index
    %0 = vector.load %arg2[%c0, %c0_0, %c0_1] : memref<1x256x64xf32, #tpu.memory_space<vmem>>, vector<1x256x64xf32>
    %1 = vector.shape_cast %0 : vector<1x256x64xf32> to vector<256x64xf32>
    %cst = arith.constant dense<0.000000e+00> : vector<64xf32>
    %2 = vector.multi_reduction <add>, %1, %cst [0] : vector<256x64xf32> to vector<64xf32>
    %3 = vector.shape_cast %2 : vector<64xf32> to vector<1x64xf32>
    %4 = arith.mulf %1, %1 : vector<256x64xf32>
    %cst_2 = arith.constant dense<0.000000e+00> : vector<64xf32>
    %5 = vector.multi_reduction <add>, %4, %cst_2 [0] : vector<256x64xf32> to vector<64xf32>
    %6 = vector.shape_cast %5 : vector<64xf32> to vector<1x64xf32>
    %c0_i32 = arith.constant 0 : i32
    %7 = arith.cmpi eq, %arg1, %c0_i32 : i32
    %8 = arith.extui %7 : i1 to i32
    %c0_i32_3 = arith.constant 0 : i32
    %9 = arith.cmpi ne, %8, %c0_i32_3 : i32
    scf.if %9 {
      %c0_6 = arith.constant 0 : index
      %c0_7 = arith.constant 0 : index
      %c0_8 = arith.constant 0 : index
      %13 = vector.load %arg3[%c0_6, %c0_7, %c0_8] : memref<1x1x64xf32, #tpu.memory_space<vmem>>, vector<1x1x64xf32>
      %14 = vector.shape_cast %13 : vector<1x1x64xf32> to vector<1x64xf32>
      %15 = vector.shape_cast %3 : vector<1x64xf32> to vector<1x1x64xf32>
      tpu.vector_store %arg3[%c0_6, %c0_7, %c0_8], %15 {strides = array<i32>} : memref<1x1x64xf32, #tpu.memory_space<vmem>>, vector<1x1x64xf32>,
      %c0_9 = arith.constant 0 : index
      %c0_10 = arith.constant 0 : index
      %c0_11 = arith.constant 0 : index
      %16 = vector.load %arg4[%c0_9, %c0_10, %c0_11] : memref<1x1x64xf32, #tpu.memory_space<vmem>>, vector<1x1x64xf32>
      %17 = vector.shape_cast %16 : vector<1x1x64xf32> to vector<1x64xf32>
      %18 = vector.shape_cast %6 : vector<1x64xf32> to vector<1x1x64xf32>
      tpu.vector_store %arg4[%c0_9, %c0_10, %c0_11], %18 {strides = array<i32>} : memref<1x1x64xf32, #tpu.memory_space<vmem>>, vector<1x1x64xf32>,
    } else {
    }
    %c0_i32_4 = arith.constant 0 : i32
    %10 = arith.cmpi ne, %arg1, %c0_i32_4 : i32
    %11 = arith.extui %10 : i1 to i32
    %c0_i32_5 = arith.constant 0 : i32
    %12 = arith.cmpi ne, %11, %c0_i32_5 : i32
    scf.if %12 {
      %c0_6 = arith.constant 0 : index
      %c0_7 = arith.constant 0 : index
      %c0_8 = arith.constant 0 : index
      %13 = vector.load %arg3[%c0_6, %c0_7, %c0_8] : memref<1x1x64xf32, #tpu.memory_space<vmem>>, vector<1x1x64xf32>
      %14 = vector.shape_cast %13 : vector<1x1x64xf32> to vector<1x64xf32>
      %15 = arith.addf %14, %3 : vector<1x64xf32>
      %c0_9 = arith.constant 0 : index
      %c0_10 = arith.constant 0 : index
      %c0_11 = arith.constant 0 : index
      %16 = vector.load %arg3[%c0_9, %c0_10, %c0_11] : memref<1x1x64xf32, #tpu.memory_space<vmem>>, vector<1x1x64xf32>
      %17 = vector.shape_cast %16 : vector<1x1x64xf32> to vector<1x64xf32>
      %18 = vector.shape_cast %15 : vector<1x64xf32> to vector<1x1x64xf32>
      tpu.vector_store %arg3[%c0_9, %c0_10, %c0_11], %18 {strides = array<i32>} : memref<1x1x64xf32, #tpu.memory_space<vmem>>, vector<1x1x64xf32>,
      %c0_12 = arith.constant 0 : index
      %c0_13 = arith.constant 0 : index
      %c0_14 = arith.constant 0 : index
      %19 = vector.load %arg4[%c0_12, %c0_13, %c0_14] : memref<1x1x64xf32, #tpu.memory_space<vmem>>, vector<1x1x64xf32>
      %20 = vector.shape_cast %19 : vector<1x1x64xf32> to vector<1x64xf32>
      %21 = arith.addf %20, %6 : vector<1x64xf32>
      %c0_15 = arith.constant 0 : index
      %c0_16 = arith.constant 0 : index
      %c0_17 = arith.constant 0 : index
      %22 = vector.load %arg4[%c0_15, %c0_16, %c0_17] : memref<1x1x64xf32, #tpu.memory_space<vmem>>, vector<1x1x64xf32>
      %23 = vector.shape_cast %22 : vector<1x1x64xf32> to vector<1x64xf32>
      %24 = vector.shape_cast %21 : vector<1x64xf32> to vector<1x1x64xf32>
      tpu.vector_store %arg4[%c0_15, %c0_16, %c0_17], %24 {strides = array<i32>} : memref<1x1x64xf32, #tpu.memory_space<vmem>>, vector<1x1x64xf32>,
    } else {
    }
    return
  }
  func.func @transform_0(%arg0: i32, %arg1: i32) -> (i32, i32, i32) {
    %c0_i32 = arith.constant 0 : i32
    %c0_i32_0 = arith.constant 0 : i32
    return %arg0, %arg1, %c0_i32 : i32, i32, i32
  }
  func.func @transform_1(%arg0: i32, %arg1: i32) -> (i32, i32, i32) {
    %c0_i32 = arith.constant 0 : i32
    %c0_i32_0 = arith.constant 0 : i32
    %c0_i32_1 = arith.constant 0 : i32
    return %arg0, %c0_i32, %c0_i32_0 : i32, i32, i32
  }
  func.func @transform_2(%arg0: i32, %arg1: i32) -> (i32, i32, i32) {
    %c0_i32 = arith.constant 0 : i32
    %c0_i32_0 = arith.constant 0 : i32
    %c0_i32_1 = arith.constant 0 : i32
    return %arg0, %c0_i32, %c0_i32_0 : i32, i32, i32
  }
}

</mosaic_0001>

<llo_original>
// kernel: tpu_custom_call.1
$region0: #{tpu_custom_call.1}
  #allocation0 [shape = 'u32[]', space=smem, size = 0x4, offset = 0x4, fixed_abs, tag = 'smem constant byte address 0x4 - core index']
  #allocation1 [shape = 'u32[144,128]{1,0:T(1,128)}', space=vmem, size = 0x12000, scoped, tag = 'internal scratch']
  %s0 = inlined_call_operand.vmem [shape: f32[2,256,64], index: 0, kind: input, shape index: {}]
  %s1 = inlined_call_operand.hbm [shape: f32[2,1,64], index: 1, kind: output, shape index: {0}]
  %s2 = inlined_call_operand.hbm [shape: f32[2,1,64], index: 2, kind: output, shape index: {1}]
  %3 = xla_tuple %s1, %s2
  %s4 = sld [smem:[#allocation0]]
  $region53: #{tpu_custom_call.1} parent=0
    _
  %s6 = ssub.s32 1, %s4
  %s7 = scalar_select 0, %s6, %s4
  $region1: #{tpu_custom_call.1} parent=0
    #allocation2 [shape = 'u8[1024]{0}', space=vmem, size = 0x400, scoped, tag = 'output window, operand 0']
    #allocation3 [shape = 's32[2]{0}', space=sflag, size = 0x8, scoped, tag = 'scoped memory for tpu_custom_call.1']
    #allocation4 [shape = 'u8[1024]{0}', space=vmem, size = 0x400, scoped, tag = 'output window, operand 1']
    #allocation5 [shape = 's32[2]{0}', space=sflag, size = 0x8, scoped, tag = 'scoped memory for tpu_custom_call.1']
    %8 = vsyncpa [#allocation3], 0
    %s9 = scalar_lea.sflag [#allocation3], 1
    %10 = vsyncpa %s9, 0
    %11 = vsyncpa [#allocation5], 0
    %s12 = scalar_lea.sflag [#allocation5], 1
    %13 = vsyncpa %s12, 0
    loop: start=0, step=1, limit=4
    $region2: #{tpu_custom_call.1} parent=1 // loop_pre_header
      _
    $region3: #{tpu_custom_call.1} parent=1 // loop_header
      %s15 = sphi 0, %s19
      %p16 = scmp.ge.s32.totalorder %s15, 4
      %s22 = sphi 0, %s34
      %s23 = sphi 0, %s30
      %s24 = sphi 0, %s22
      %s25 = sphi 0, %s23
      %s26 = sphi 0, %s24
      %s27 = sphi 0, %s25
      %s39 = sphi 0, %s41
      %s42 = sphi 0, %s39
      %s43 = sphi 0, %s42
      %s59 = sphi 0, %s43
      %s65 = sphi 0, %s67
      %s68 = sphi 0, %s65
      %s69 = sphi 0, %s68
      %s85 = sphi 0, %s69
      %s91 = sphi 0, %s93
      %s94 = sphi 0, %s91
      %s95 = sphi 0, %s94
      %s111 = sphi 0, %s95
    $region4: #{tpu_custom_call.1} parent=1 // loop_header_branch
      %18 = sbr.rel (%p16) target = $region8
    $region5: #{tpu_custom_call.1} parent=1 // loop_body
      %s20 = ssub.s32 %s15, 1
      %s21 = ssub.s32 %s15, 2
      %s28 = sadd.s32 1, %s23
      %p29 = scmp.ge.s32.totalorder %s28, 1
      %s30 = scalar_select %p29, 0, %s28
      %s31 = sadd.s32 1, %s22
      %s32 = scalar_select %p29, %s31, %s22
      %p33 = scmp.ge.s32.totalorder %s32, 2
      %s34 = scalar_select %p33, 0, %s32
      %s35 = ssub.s32 %s22, %s34
      %s36 = ssub.s32 %s23, %s30
      %s37 = sor.u32 %s35, %s36
      %p38 = scmp.eq.s32.totalorder %s37, 0
      %s40 = sadd.s32 %s39, 1
      %s41 = scalar_select %p38, %s39, %s40
      %p44 = pneg %p38
      %p45 = scmp.eq.s32.totalorder %s15, 1
      %p46 = por %p44, %p45
      %p47 = scmp.ne.s32.totalorder %s39, %s42
      %p48 = scmp.eq.s32.totalorder %s15, 0
      %p49 = por %p47, %p48
      %p50 = scmp.ne.s32.totalorder %s39, %s42
      %p51 = scmp.eq.s32.totalorder %s20, 1
      %p52 = por %p50, %p51
      %p53 = scmp.ne.s32.totalorder %s42, %s43
      %p54 = scmp.eq.s32.totalorder %s20, 0
      %p55 = por %p53, %p54
      %p56 = scmp.ne.s32.totalorder %s42, %s43
      %p57 = scmp.eq.s32.totalorder %s21, 1
      %p58 = por %p56, %p57
      %p60 = scmp.ne.s32.totalorder %s43, %s59
      %p61 = scmp.eq.s32.totalorder %s21, 0
      %p62 = por %p60, %p61
      %s63 = ssub.s32 %s22, %s34
      %p64 = scmp.eq.s32.totalorder %s63, 0
      %s66 = sadd.s32 %s65, 1
      %s67 = scalar_select %p64, %s65, %s66
      %p70 = pneg %p64
      %p71 = scmp.eq.s32.totalorder %s15, 1
      %p72 = por %p70, %p71
      %p73 = scmp.ne.s32.totalorder %s65, %s68
      %p74 = scmp.eq.s32.totalorder %s15, 0
      %p75 = por %p73, %p74
      %p76 = scmp.ne.s32.totalorder %s65, %s68
      %p77 = scmp.eq.s32.totalorder %s20, 1
      %p78 = por %p76, %p77
      %p79 = scmp.ne.s32.totalorder %s68, %s69
      %p80 = scmp.eq.s32.totalorder %s20, 0
      %p81 = por %p79, %p80
      %p82 = scmp.ne.s32.totalorder %s68, %s69
      %p83 = scmp.eq.s32.totalorder %s21, 1
      %p84 = por %p82, %p83
      %p86 = scmp.ne.s32.totalorder %s69, %s85
      %p87 = scmp.eq.s32.totalorder %s21, 0
      %p88 = por %p86, %p87
      %s89 = ssub.s32 %s22, %s34
      %p90 = scmp.eq.s32.totalorder %s89, 0
      %s92 = sadd.s32 %s91, 1
      %s93 = scalar_select %p90, %s91, %s92
      %p96 = pneg %p90
      %p97 = scmp.eq.s32.totalorder %s15, 1
      %p98 = por %p96, %p97
      %p99 = scmp.ne.s32.totalorder %s91, %s94
      %p100 = scmp.eq.s32.totalorder %s15, 0
      %p101 = por %p99, %p100
      %p102 = scmp.ne.s32.totalorder %s91, %s94
      %p103 = scmp.eq.s32.totalorder %s20, 1
      %p104 = por %p102, %p103
      %p105 = scmp.ne.s32.totalorder %s94, %s95
      %p106 = scmp.eq.s32.totalorder %s20, 0
      %p107 = por %p105, %p106
      %p108 = scmp.ne.s32.totalorder %s94, %s95
      %p109 = scmp.eq.s32.totalorder %s21, 1
      %p110 = por %p108, %p109
      %p112 = scmp.ne.s32.totalorder %s95, %s111
      %p113 = scmp.eq.s32.totalorder %s21, 0
      %p114 = por %p112, %p113
      %p115 = scmp.le.s32.totalorder 1, %s15
      %p116 = scmp.lt.s32.totalorder %s15, 3
      %p117 = pnand %p115, %p116
      %p118 = pneg %p117
      // Predicated region
      $region9: #{tpu_custom_call.1} parent=5 // pred_check
        _
      $region10: #{tpu_custom_call.1} parent=5 // pred_check_branch
        %120 = sbr.rel (%p117) target = $region12
      $region11: #{tpu_custom_call.1} parent=5 // pred_region
        %s121 = ssub.s32 %s15, 1
      $region12: #{tpu_custom_call.1} parent=5 // pred_fallthru
        _
      %p122 = scmp.lt.s32.totalorder %s15, 2
      // Predicated region
      $region13: #{tpu_custom_call.1} parent=5 // pred_check
        %p123 = pneg %p122
      $region14: #{tpu_custom_call.1} parent=5 // pred_check_branch
        %125 = sbr.rel (%p123) target = $region16
      $region15: #{tpu_custom_call.1} parent=5 // pred_region
        // Predicated region
        $region17: #{tpu_custom_call.1} parent=15 // pred_check
          %p126 = pneg %p49
        $region18: #{tpu_custom_call.1} parent=15 // pred_check_branch
          %128 = sbr.rel (%p126) target = $region20
        $region19: #{tpu_custom_call.1} parent=15 // pred_region
          %s129 = smul.u32 32, %s23
          %p130 = scmp.lt.s32.totalorder %s22, 1
          %s131 = scalar_select %p130, %s22, 1
          %p132 = scmp.lt.s32.totalorder %s129, 31
          %s133 = scalar_select %p132, %s129, 31
          %s134 = smul.addr %s131, 32
          %s135 = sadd.s32 %s133, %s134
          %s136 = smul.addr %s135, 8
          %s137 = scalar_lea.vmem %s0, %s136
          %s138 = smul.u32 32, %s23
        $region20: #{tpu_custom_call.1} parent=15 // pred_fallthru
          _
      $region16: #{tpu_custom_call.1} parent=5 // pred_fallthru
        _
      %p139 = scmp.le.s32.totalorder 1, %s15
      %p140 = scmp.lt.s32.totalorder %s15, 3
      %p141 = pnand %p139, %p140
      %p142 = pneg %p141
      // Predicated region
      $region21: #{tpu_custom_call.1} parent=5 // pred_check
        _
      $region22: #{tpu_custom_call.1} parent=5 // pred_check_branch
        %144 = sbr.rel (%p141) target = $region24
      $region23: #{tpu_custom_call.1} parent=5 // pred_region
        %s145 = ssub.s32 %s15, 1
        %s146 = smul.u32 32, %s25
        %p147 = scmp.lt.s32.totalorder %s24, 1
        %s148 = scalar_select %p147, %s24, 1
        %p149 = scmp.lt.s32.totalorder %s146, 31
        %s150 = scalar_select %p149, %s146, 31
        %s151 = smul.addr %s148, 32
        %s152 = sadd.s32 %s150, %s151
        %s153 = smul.addr %s152, 8
        %s154 = scalar_lea.vmem %s0, %s153
        %p155 = pneg %p55
        %p156 = pneg %p52
        %p157 = pneg %p81
        %p158 = pneg %p78
        %s159 = sand.u32 %s68, 1
        %s160 = scalar_lea.sflag [#allocation3], %s159
        %s161 = sand.u32 %s68, 1
        %s162 = scalar_lea.vmem [#allocation2], %s161
        %p163 = pneg %p107
        %p164 = pneg %p104
        %s165 = sand.u32 %s94, 1
        %s166 = scalar_lea.sflag [#allocation5], %s165
        %s167 = sand.u32 %s94, 1
        %s168 = scalar_lea.vmem [#allocation4], %s167
        %s169 = smul.u32 32, %s25
        %p170 = scmp.lt.s32.totalorder %s24, 1
        %s171 = scalar_select %p170, %s24, 1
        %p172 = scmp.lt.s32.totalorder %s169, 31
        %s173 = scalar_select %p172, %s169, 31
        %s174 = smul.addr %s171, 32
        %s175 = sadd.s32 %s173, %s174
        %s176 = smul.addr %s175, 8
        %s177 = scalar_lea.vmem %s0, %s176
        %s178 = smul.u32 32, %s25
        %v179 = vld [vmem:[%s177] sm:$0xff]
        %v180 = vld [vmem:[%s177 + $0x8] sm:$0xff]
        %v181 = vld [vmem:[%s177 + $0x10] sm:$0xff]
        %v182 = vld [vmem:[%s177 + $0x18] sm:$0xff]
        %v183 = vld [vmem:[%s177 + $0x20] sm:$0xff]
        %v184 = vld [vmem:[%s177 + $0x28] sm:$0xff]
        %v185 = vld [vmem:[%s177 + $0x30] sm:$0xff]
        %v186 = vld [vmem:[%s177 + $0x38] sm:$0xff]
        %v187 = vld [vmem:[%s177 + $0x40] sm:$0xff]
        %v188 = vld [vmem:[%s177 + $0x48] sm:$0xff]
        %v189 = vld [vmem:[%s177 + $0x50] sm:$0xff]
        %v190 = vld [vmem:[%s177 + $0x58] sm:$0xff]
        %v191 = vld [vmem:[%s177 + $0x60] sm:$0xff]
        %v192 = vld [vmem:[%s177 + $0x68] sm:$0xff]
        %v193 = vld [vmem:[%s177 + $0x70] sm:$0xff]
        %v194 = vld [vmem:[%s177 + $0x78] sm:$0xff]
        %v195 = vld [vmem:[%s177 + $0x80] sm:$0xff]
        %v196 = vld [vmem:[%s177 + $0x88] sm:$0xff]
        %v197 = vld [vmem:[%s177 + $0x90] sm:$0xff]
        %v198 = vld [vmem:[%s177 + $0x98] sm:$0xff]
        %v199 = vld [vmem:[%s177 + $0xa0] sm:$0xff]
        %v200 = vld [vmem:[%s177 + $0xa8] sm:$0xff]
        %v201 = vld [vmem:[%s177 + $0xb0] sm:$0xff]
        %v202 = vld [vmem:[%s177 + $0xb8] sm:$0xff]
        %v203 = vld [vmem:[%s177 + $0xc0] sm:$0xff]
        %v204 = vld [vmem:[%s177 + $0xc8] sm:$0xff]
        %v205 = vld [vmem:[%s177 + $0xd0] sm:$0xff]
        %v206 = vld [vmem:[%s177 + $0xd8] sm:$0xff]
        %v207 = vld [vmem:[%s177 + $0xe0] sm:$0xff]
        %v208 = vld [vmem:[%s177 + $0xe8] sm:$0xff]
        %v209 = vld [vmem:[%s177 + $0xf0] sm:$0xff]
        %v210 = vld [vmem:[%s177 + $0xf8] sm:$0xff]
        %vm211 = vcmask 523264
        %v212 = vsel %vm211, %v179, 0.0
        %v213 = vsel %vm211, %v180, 0.0
        %v214 = vadd.f32 %v212, %v213
        %v215 = vsel %vm211, %v181, 0.0
        %v216 = vadd.f32 %v214, %v215
        %v217 = vsel %vm211, %v182, 0.0
        %v218 = vadd.f32 %v216, %v217
        %v219 = vsel %vm211, %v183, 0.0
        %v220 = vadd.f32 %v218, %v219
        %v221 = vsel %vm211, %v184, 0.0
        %v222 = vadd.f32 %v220, %v221
        %v223 = vsel %vm211, %v185, 0.0
        %v224 = vadd.f32 %v222, %v223
        %v225 = vsel %vm211, %v186, 0.0
        %v226 = vadd.f32 %v224, %v225
        %v227 = vsel %vm211, %v187, 0.0
        %v228 = vadd.f32 %v226, %v227
        %v229 = vsel %vm211, %v188, 0.0
        %v230 = vadd.f32 %v228, %v229
        %v231 = vsel %vm211, %v189, 0.0
        %v232 = vadd.f32 %v230, %v231
        %v233 = vsel %vm211, %v190, 0.0
        %v234 = vadd.f32 %v232, %v233
        %v235 = vsel %vm211, %v191, 0.0
        %v236 = vadd.f32 %v234, %v235
        %v237 = vsel %vm211, %v192, 0.0
        %v238 = vadd.f32 %v236, %v237
        %v239 = vsel %vm211, %v193, 0.0
        %v240 = vadd.f32 %v238, %v239
        %v241 = vsel %vm211, %v194, 0.0
        %v242 = vadd.f32 %v240, %v241
        %v243 = vsel %vm211, %v195, 0.0
        %v244 = vadd.f32 %v242, %v243
        %v245 = vsel %vm211, %v196, 0.0
        %v246 = vadd.f32 %v244, %v245
        %v247 = vsel %vm211, %v197, 0.0
        %v248 = vadd.f32 %v246, %v247
        %v249 = vsel %vm211, %v198, 0.0
        %v250 = vadd.f32 %v248, %v249
        %v251 = vsel %vm211, %v199, 0.0
        %v252 = vadd.f32 %v250, %v251
        %v253 = vsel %vm211, %v200, 0.0
        %v254 = vadd.f32 %v252, %v253
        %v255 = vsel %vm211, %v201, 0.0
        %v256 = vadd.f32 %v254, %v255
        %v257 = vsel %vm211, %v202, 0.0
        %v258 = vadd.f32 %v256, %v257
        %v259 = vsel %vm211, %v203, 0.0
        %v260 = vadd.f32 %v258, %v259
        %v261 = vsel %vm211, %v204, 0.0
        %v262 = vadd.f32 %v260, %v261
        %v263 = vsel %vm211, %v205, 0.0
        %v264 = vadd.f32 %v262, %v263
        %v265 = vsel %vm211, %v206, 0.0
        %v266 = vadd.f32 %v264, %v265
        %v267 = vsel %vm211, %v207, 0.0
        %v268 = vadd.f32 %v266, %v267
        %v269 = vsel %vm211, %v208, 0.0
        %v270 = vadd.f32 %v268, %v269
        %v271 = vsel %vm211, %v209, 0.0
        %v272 = vadd.f32 %v270, %v271
        %v273 = vsel %vm211, %v210, 0.0
        %v274 = vadd.f32 %v272, %v273
        %v275 = vrot.slane %v274, 4
        %v276 = vadd.f32 %v274, %v275
        %v277 = vrot.slane %v276, 2
        %v278 = vadd.f32 %v276, %v277
        %v279 = vrot.slane %v278, 1
        %v280 = vadd.f32 %v278, %v279
        %v281 = vmul.f32 %v179, %v179
        %v282 = vmul.f32 %v180, %v180
        %v283 = vmul.f32 %v181, %v181
        %v284 = vmul.f32 %v182, %v182
        %v285 = vmul.f32 %v183, %v183
        %v286 = vmul.f32 %v184, %v184
        %v287 = vmul.f32 %v185, %v185
        %v288 = vmul.f32 %v186, %v186
        %v289 = vmul.f32 %v187, %v187
        %v290 = vmul.f32 %v188, %v188
        %v291 = vmul.f32 %v189, %v189
        %v292 = vmul.f32 %v190, %v190
        %v293 = vmul.f32 %v191, %v191
        %v294 = vmul.f32 %v192, %v192
        %v295 = vmul.f32 %v193, %v193
        %v296 = vmul.f32 %v194, %v194
        %v297 = vmul.f32 %v195, %v195
        %v298 = vmul.f32 %v196, %v196
        %v299 = vmul.f32 %v197, %v197
        %v300 = vmul.f32 %v198, %v198
        %v301 = vmul.f32 %v199, %v199
        %v302 = vmul.f32 %v200, %v200
        %v303 = vmul.f32 %v201, %v201
        %v304 = vmul.f32 %v202, %v202
        %v305 = vmul.f32 %v203, %v203
        %v306 = vmul.f32 %v204, %v204
        %v307 = vmul.f32 %v205, %v205
        %v308 = vmul.f32 %v206, %v206
        %v309 = vmul.f32 %v207, %v207
        %v310 = vmul.f32 %v208, %v208
        %v311 = vmul.f32 %v209, %v209
        %v312 = vmul.f32 %v210, %v210
        %v313 = vsel %vm211, %v281, 0.0
        %v314 = vsel %vm211, %v282, 0.0
        %v315 = vadd.f32 %v313, %v314
        %v316 = vsel %vm211, %v283, 0.0
        %v317 = vadd.f32 %v315, %v316
        %v318 = vsel %vm211, %v284, 0.0
        %v319 = vadd.f32 %v317, %v318
        %v320 = vsel %vm211, %v285, 0.0
        %v321 = vadd.f32 %v319, %v320
        %v322 = vsel %vm211, %v286, 0.0
        %v323 = vadd.f32 %v321, %v322
        %v324 = vsel %vm211, %v287, 0.0
        %v325 = vadd.f32 %v323, %v324
        %v326 = vsel %vm211, %v288, 0.0
        %v327 = vadd.f32 %v325, %v326
        %v328 = vsel %vm211, %v289, 0.0
        %v329 = vadd.f32 %v327, %v328
        %v330 = vsel %vm211, %v290, 0.0
        %v331 = vadd.f32 %v329, %v330
        %v332 = vsel %vm211, %v291, 0.0
        %v333 = vadd.f32 %v331, %v332
        %v334 = vsel %vm211, %v292, 0.0
        %v335 = vadd.f32 %v333, %v334
        %v336 = vsel %vm211, %v293, 0.0
        %v337 = vadd.f32 %v335, %v336
        %v338 = vsel %vm211, %v294, 0.0
        %v339 = vadd.f32 %v337, %v338
        %v340 = vsel %vm211, %v295, 0.0
        %v341 = vadd.f32 %v339, %v340
        %v342 = vsel %vm211, %v296, 0.0
        %v343 = vadd.f32 %v341, %v342
        %v344 = vsel %vm211, %v297, 0.0
        %v345 = vadd.f32 %v343, %v344
        %v346 = vsel %vm211, %v298, 0.0
        %v347 = vadd.f32 %v345, %v346
        %v348 = vsel %vm211, %v299, 0.0
        %v349 = vadd.f32 %v347, %v348
        %v350 = vsel %vm211, %v300, 0.0
        %v351 = vadd.f32 %v349, %v350
        %v352 = vsel %vm211, %v301, 0.0
        %v353 = vadd.f32 %v351, %v352
        %v354 = vsel %vm211, %v302, 0.0
        %v355 = vadd.f32 %v353, %v354
        %v356 = vsel %vm211, %v303, 0.0
        %v357 = vadd.f32 %v355, %v356
        %v358 = vsel %vm211, %v304, 0.0
        %v359 = vadd.f32 %v357, %v358
        %v360 = vsel %vm211, %v305, 0.0
        %v361 = vadd.f32 %v359, %v360
        %v362 = vsel %vm211, %v306, 0.0
        %v363 = vadd.f32 %v361, %v362
        %v364 = vsel %vm211, %v307, 0.0
        %v365 = vadd.f32 %v363, %v364
        %v366 = vsel %vm211, %v308, 0.0
        %v367 = vadd.f32 %v365, %v366
        %v368 = vsel %vm211, %v309, 0.0
        %v369 = vadd.f32 %v367, %v368
        %v370 = vsel %vm211, %v310, 0.0
        %v371 = vadd.f32 %v369, %v370
        %v372 = vsel %vm211, %v311, 0.0
        %v373 = vadd.f32 %v371, %v372
        %v374 = vsel %vm211, %v312, 0.0
        %v375 = vadd.f32 %v373, %v374
        %v376 = vrot.slane %v375, 4
        %v377 = vadd.f32 %v375, %v376
        %v378 = vrot.slane %v377, 2
        %v379 = vadd.f32 %v377, %v378
        %v380 = vrot.slane %v379, 1
        %v381 = vadd.f32 %v379, %v380
        %p382 = scmp.eq.s32.totalorder %s25, 0
        // Predicated region
        $region25: #{tpu_custom_call.1} parent=23 // pred_check
          %p383 = pneg %p382
        $region26: #{tpu_custom_call.1} parent=23 // pred_check_branch
          %385 = sbr.rel (%p383) target = $region28
        $region27: #{tpu_custom_call.1} parent=23 // pred_region
          %vm386 = vcmask 516096
          %387 = vst.msk [vmem:[%s162] sm:$0x1] %vm386, %v280
          %388 = vst.msk [vmem:[%s168] sm:$0x1] %vm386, %v381
        $region28: #{tpu_custom_call.1} parent=23 // pred_fallthru
          _
        %p389 = scmp.ne.s32.totalorder %s25, 0
        // Predicated region
        $region29: #{tpu_custom_call.1} parent=23 // pred_check
          %p390 = pneg %p389
        $region30: #{tpu_custom_call.1} parent=23 // pred_check_branch
          %392 = sbr.rel (%p390) target = $region32
        $region31: #{tpu_custom_call.1} parent=23 // pred_region
          %v393 = vld [vmem:[%s162] sm:$0x1]
          %v394 = vadd.f32 %v393, %v280
          %vm395 = vcmask 516096
          %396 = vst.msk [vmem:[%s162] sm:$0x1] %vm395, %v394
          %v397 = vld [vmem:[%s168] sm:$0x1]
          %v398 = vadd.f32 %v397, %v381
          %399 = vst.msk [vmem:[%s168] sm:$0x1] %vm395, %v398
        $region32: #{tpu_custom_call.1} parent=23 // pred_fallthru
          _
        %s400 = sand.u32 %s68, 1
        %s401 = scalar_lea.sflag [#allocation3], %s400
        %s402 = sand.u32 %s68, 1
        %s403 = scalar_lea.vmem [#allocation2], %s402
        %s404 = sand.u32 %s94, 1
        %s405 = scalar_lea.sflag [#allocation5], %s404
        %s406 = sand.u32 %s94, 1
        %s407 = scalar_lea.vmem [#allocation4], %s406
        // Predicated region
        $region33: #{tpu_custom_call.1} parent=23 // pred_check
          %p408 = pneg %p78
        $region34: #{tpu_custom_call.1} parent=23 // pred_check_branch
          %410 = sbr.rel (%p408) target = $region36
        $region35: #{tpu_custom_call.1} parent=23 // pred_region
          %s412 = ssub.s32 16, 16
          %413 = vsyncadd %s401, %s412
          %s414 = smul.addr %s24, 16
          %s415 = scalar_lea.hbm %s1, %s414
          %s417 = sshll.u32 %s403, 4
          %s418 = int_to_ptr.vmem [resolvable:$true] %s417
          %420 = dma.vmem_to_hbm [thread:$0]  %s418, 16, %s415, %s401
        $region36: #{tpu_custom_call.1} parent=23 // pred_fallthru
          _
        // Predicated region
        $region37: #{tpu_custom_call.1} parent=23 // pred_check
          %p421 = pneg %p104
        $region38: #{tpu_custom_call.1} parent=23 // pred_check_branch
          %423 = sbr.rel (%p421) target = $region40
        $region39: #{tpu_custom_call.1} parent=23 // pred_region
          %s425 = ssub.s32 16, 16
          %426 = vsyncadd %s405, %s425
          %s427 = smul.addr %s24, 16
          %s428 = scalar_lea.hbm %s2, %s427
          %s430 = sshll.u32 %s407, 4
          %s431 = int_to_ptr.vmem [resolvable:$true] %s430
          %433 = dma.vmem_to_hbm [thread:$0]  %s431, 16, %s428, %s405
        $region40: #{tpu_custom_call.1} parent=23 // pred_fallthru
          _
      $region24: #{tpu_custom_call.1} parent=5 // pred_fallthru
        _
      %p434 = scmp.le.s32.totalorder 2, %s15
      // Predicated region
      $region41: #{tpu_custom_call.1} parent=5 // pred_check
        %p435 = pneg %p434
      $region42: #{tpu_custom_call.1} parent=5 // pred_check_branch
        %437 = sbr.rel (%p435) target = $region44
      $region43: #{tpu_custom_call.1} parent=5 // pred_region
        %s438 = ssub.s32 %s15, 2
        // Predicated region
        $region45: #{tpu_custom_call.1} parent=43 // pred_check
          %p439 = pneg %p84
        $region46: #{tpu_custom_call.1} parent=43 // pred_check_branch
          %441 = sbr.rel (%p439) target = $region48
        $region47: #{tpu_custom_call.1} parent=43 // pred_region
          %s442 = sand.u32 %s69, 1
          %s443 = scalar_lea.sflag [#allocation3], %s442
          %s444 = sand.u32 %s69, 1
          %s445 = scalar_lea.vmem [#allocation2], %s444
          %446 = dma.done %s443, 16
        $region48: #{tpu_custom_call.1} parent=43 // pred_fallthru
          _
        // Predicated region
        $region49: #{tpu_custom_call.1} parent=43 // pred_check
          %p447 = pneg %p110
        $region50: #{tpu_custom_call.1} parent=43 // pred_check_branch
          %449 = sbr.rel (%p447) target = $region52
        $region51: #{tpu_custom_call.1} parent=43 // pred_region
          %s450 = sand.u32 %s95, 1
          %s451 = scalar_lea.sflag [#allocation5], %s450
          %s452 = sand.u32 %s95, 1
          %s453 = scalar_lea.vmem [#allocation4], %s452
          %454 = dma.done %s451, 16
        $region52: #{tpu_custom_call.1} parent=43 // pred_fallthru
          _
      $region44: #{tpu_custom_call.1} parent=5 // pred_fallthru
        _
    $region6: #{tpu_custom_call.1} parent=1 // loop_footer
      %s19 = sadd.s32 1, %s15
    $region7: #{tpu_custom_call.1} parent=1 // loop_footer_branch
      %14 = sbr.rel target = $region3
    $region8: #{tpu_custom_call.1} parent=1 // loop_exit
      _
    %455 = vsyncpa [#allocation3], 1
    %s456 = scalar_lea.sflag [#allocation3], 1
    %457 = vsyncpa %s456, 1
    %458 = vsyncpa [#allocation5], 1
    %s459 = scalar_lea.sflag [#allocation5], 1
    %460 = vsyncpa %s459, 1

</llo_original>
